<compile_context>
chip_gen: v6e
topology: v6e:2x2x1
jax: 0.10.0
libtpu: 0.0.40
codegen_flags: <defaults>
</compile_context>

<pallas_src>
import functools

import numpy as np
import jax
import jax.numpy as jnp
from jax.experimental import pallas as pl
from jax.experimental.pallas import tpu as pltpu


_TRIL_BLOCK_BYTES = 512 * 1024     # per-operand block byte target for the tril kernel
_DIAG_VMEM_BUDGET = 40 * 2**20     # VMEM budget used to size the diag edge tile


def _round_up(x, m):
    return ((x + m - 1) // m) * m


def _vmem_cap():
    """~75% of the physical per-core VMEM; conservative 48 MiB fallback (fits v7x)."""
    try:
        cap = int(pltpu.get_tpu_info().vmem_capacity_bytes)
    except Exception:
        cap = 64 * 2**20
    return max(16 * 2**20, (cap * 3) // 4)


def _vmem_limit(blockset_bytes):
    """Explicit scoped-VMEM budget: double-buffered block set + headroom, capped per chip."""
    want = int(blockset_bytes * 3 // 2) + (4 * 2**20)
    return int(min(_vmem_cap(), max(want, 24 * 2**20)))


# ----------------------------------------------------------------------------
# Pallas kernels
# ----------------------------------------------------------------------------
def _outer_rows(a, b, d):
    """a, b: (d, T).  Returns (d*d, T) with row i*d+j = a[i, :] * b[j, :]  (full-width FMA)."""
    t = a.shape[-1]
    a_rep = jnp.broadcast_to(a[:, None, :], (d, d, t)).reshape(d * d, t)   # row i*d+j = a[i]
    b_til = jnp.broadcast_to(b[None, :, :], (d, d, t)).reshape(d * d, t)   # row i*d+j = b[j]
    return a_rep * b_til


def _tril_kernel(l_ref, r_ref, out_ref, *, d):
    """out[i*d+j, e] = -sum_k L[e,k,i] * R[e,k,j]   (edges on the lane axis)."""
    acc = _outer_rows(l_ref[0], r_ref[0], d)
    for k in range(1, d):                                    # static unroll (d is small)
        acc = acc + _outer_rows(l_ref[k], r_ref[k], d)
    out_ref[...] = -acc                                      # single lane-dense store, no concat


def _diag_kernel(m_ref, sel_ref, diag_ref, *, d):
    """diag[i*d+j, n] += sum_e onehot[e,n] * sum_k M[e,k,i]*M[e,k,j].

    Grid is (node_tiles, edge_tiles); the accumulator block is resident across the
    edge axis and re-initialised at the start of every node tile's edge sweep.
    """
    @pl.when(pl.program_id(1) == 0)
    def _init():
        diag_ref[...] = jnp.zeros_like(diag_ref)

    acc = _outer_rows(m_ref[0], m_ref[0], d)
    for k in range(1, d):
        acc = acc + _outer_rows(m_ref[k], m_ref[k], d)
    # bf16 x bf16 MXU matmul with f32 accumulation.  sel is an exact 0/1 one-hot,
    # so only the bf16 rounding of the per-edge outer products affects precision.
    om_t = acc.astype(jnp.bfloat16)                          # (d*d, TILE_E)
    diag_ref[...] = diag_ref[...] + jnp.dot(
        om_t, sel_ref[...], preferred_element_type=jnp.float32)


# ----------------------------------------------------------------------------
# Index-construction glue (numpy replicas of the torch helpers)
# ----------------------------------------------------------------------------
def compute_left_right_map_index(edge_index, full_matrix=False):
    edge_to_idx = {}
    E = edge_index.shape[1]
    for e in range(E):
        edge_to_idx[(int(edge_index[0, e]), int(edge_index[1, e]))] = e
    left, right, row, col = [], [], [], []
    for e in range(E):
        s, t = int(edge_index[0, e]), int(edge_index[1, e])
        if s < t or full_matrix:
            left.append(e)
            right.append(edge_to_idx[(t, s)])
            row.append(s)
            col.append(t)
    left_right = np.stack([np.asarray(left), np.asarray(right)]).astype(np.int32)
    new_edge_index = np.stack([np.asarray(row), np.asarray(col)]).astype(np.int32)
    if full_matrix:
        assert left_right.shape[1] == E
    else:
        assert left_right.shape[1] == E // 2
    return left_right, new_edge_index


def compute_learnable_laplacian_indices(size, edge_index, learned_d, total_d):
    assert np.all(edge_index[0] < edge_index[1])
    row, col = edge_index
    row_template = np.tile(np.arange(learned_d).reshape(1, -1, 1),
                           (1, 1, learned_d))                      # [0,i,j] = i
    col_template = np.transpose(row_template, (0, 2, 1))           # [0,i,j] = j
    non_diag_row = (row_template + total_d * row.reshape(-1, 1, 1)).reshape(1, -1)
    non_diag_col = (col_template + total_d * col.reshape(-1, 1, 1)).reshape(1, -1)
    non_diag_indices = np.concatenate([non_diag_row, non_diag_col], axis=0)
    diag = np.arange(size)
    diag_row = (row_template + total_d * diag.reshape(-1, 1, 1)).reshape(1, -1)
    diag_col = (col_template + total_d * diag.reshape(-1, 1, 1)).reshape(1, -1)
    diag_indices = np.concatenate([diag_row, diag_col], axis=0)
    return diag_indices.astype(np.int32), non_diag_indices.astype(np.int32)


# ----------------------------------------------------------------------------
# Builder
# ----------------------------------------------------------------------------
class GeneralLaplacianBuilder:
    def __init__(self, size, edge_index, d,
                 normalised=False, deg_normalised=False,
                 add_hp=False, add_lp=False, augmented=True):
        assert not (normalised or deg_normalised or add_hp or add_lp), \
            "only the default (un-normalised, no hp/lp) path is implemented"
        self.d = d
        self.final_d = d
        self.size = size
        self.edge_index = np.asarray(edge_index, dtype=np.int32)
        self.edges = self.edge_index.shape[1] // 2

        self.left_right_idx, self.vertex_tril_idx = \
            compute_left_right_map_index(self.edge_index)
        self.diag_indices, self.tril_indices = \
            compute_learnable_laplacian_indices(size, self.vertex_tril_idx,
                                                self.d, self.final_d)

        E_full = self.edge_index.shape[1]
        E_tril = self.vertex_tril_idx.shape[1]
        self._E_full, self._E_tril = E_full, E_tril

        # Lane-axis gather indices (device-resident, converted once).
        self._left_idx = jnp.asarray(self.left_right_idx[0])
        self._right_idx = jnp.asarray(self.left_right_idx[1])

        # --- tril tiling: edge tile scaled by a per-block byte target (lane axis) ----
        tril_target = max(512, min(8192, _round_up(_TRIL_BLOCK_BYTES // (d * d * 4), 128)))
        self._tile_et = min(tril_target, _round_up(max(E_tril, 1), 128))
        self._e_tril_pad = _round_up(max(E_tril, 1), self._tile_et)

        # --- diag tiling: lane-dense node tile + edge tile from the real VMEM budget --
        self._tile_n = min(512, _round_up(max(size, 1), 128))
        self._n_pad = _round_up(max(size, 1), self._tile_n)
        diag_budget = min(_vmem_cap(), _DIAG_VMEM_BUDGET)
        acc_bytes = 2 * d * d * self._tile_n * 4                      # out block, 2-buffered
        per_edge = 2 * (d * d * 4 + self._tile_n * 2)                 # 2-buffered input blocks
        avail = max(diag_budget - acc_bytes - (4 * 2**20), per_edge * 128)
        ef_cap = max(128, min(8192, (avail // per_edge) // 128 * 128))
        self._tile_ef = min(ef_cap, _round_up(max(E_full, 1), 128))
        self._e_full_pad = _round_up(max(E_full, 1), self._tile_ef)

        # (E_full_pad, N_pad) bf16 one-hot "edge -> source node" selection (exact 0/1);
        # padded edge rows and padded node columns are all-zero so they contribute nothing.
        row = self.edge_index[0]
        sel = np.zeros((self._e_full_pad, self._n_pad), dtype=np.float32)
        if E_full > 0:
            sel[np.arange(E_full), row] = 1.0
        self.node_sel = jnp.asarray(sel, dtype=jnp.bfloat16)

    # ------------------------------------------------------------------ pallas
    def _tril_call(self, l_t, r_t):
        d, t, ep = self.d, self._tile_et, self._e_tril_pad
        blk_in = pl.BlockSpec((d, d, t), lambda j: (0, 0, j))
        in_bytes = d * d * t * 4
        blockset = 2 * (2 * in_bytes) + 2 * in_bytes          # double-buffered ins + out
        ce = pl.CostEstimate(flops=2 * d * d * d * ep,
                             transcendentals=0,
                             bytes_accessed=3 * d * d * ep * 4)
        return pl.pallas_call(
            functools.partial(_tril_kernel, d=d),
            grid=(ep // t,),
            in_specs=[blk_in, blk_in],
            out_specs=pl.BlockSpec((d * d, t), lambda j: (0, j)),
            out_shape=jax.ShapeDtypeStruct((d * d, ep), jnp.float32),
            compiler_params=pltpu.CompilerParams(
                dimension_semantics=("parallel",),
                vmem_limit_bytes=_vmem_limit(blockset)),
            cost_estimate=ce,
        )(l_t, r_t)

    def _diag_call(self, m_t):
        d = self.d
        te, tn = self._tile_ef, self._tile_n
        ep, npad = self._e_full_pad, self._n_pad
        n_tiles, e_tiles = npad // tn, ep // te
        blockset = 2 * (d * d * te * 4 + te * tn * 2) + 2 * (d * d * tn * 4)
        ce = pl.CostEstimate(
            flops=2 * d * d * d * ep * n_tiles + 2 * d * d * ep * npad,
            transcendentals=0,
            bytes_accessed=d * d * ep * 4 * n_tiles + ep * npad * 2 + d * d * npad * 4)
        return pl.pallas_call(
            functools.partial(_diag_kernel, d=d),
            grid=(n_tiles, e_tiles),
            in_specs=[pl.BlockSpec((d, d, te), lambda n, e: (0, 0, e)),
                      pl.BlockSpec((te, tn), lambda n, e: (e, n))],
            out_specs=pl.BlockSpec((d * d, tn), lambda n, e: (0, n)),
            out_shape=jax.ShapeDtypeStruct((d * d, npad), jnp.float32),
            compiler_params=pltpu.CompilerParams(
                dimension_semantics=("parallel", "arbitrary"),
                vmem_limit_bytes=_vmem_limit(blockset)),
            cost_estimate=ce,
        )(m_t, self.node_sel)

    # ----------------------------------------------------------------- forward
    def forward(self, maps):
        d = self.d
        maps = jnp.asarray(maps, jnp.float32)                  # (E_full, d, d)
        # One relayout to lane-major, then cheap last-axis (lane) gathers.
        m_t = jnp.transpose(maps, (1, 2, 0))                   # (d, d, E_full)
        l_t = m_t[:, :, self._left_idx]                        # (d, d, E_tril)
        r_t = m_t[:, :, self._right_idx]
        # TODO(synk): move the left/right gather into the kernel DMA (scalar-prefetched
        #             row indices + per-tile make_async_copy) so `maps` is streamed from
        #             HBM exactly once, without materialised gathered copies.

        def pad_e(x, e_pad):
            return jnp.pad(x, ((0, 0), (0, 0), (0, e_pad - x.shape[-1])))

        tril_t = self._tril_call(pad_e(l_t, self._e_tril_pad),
                                 pad_e(r_t, self._e_tril_pad))  # (d*d, E_tril_pad)
        diag_t = self._diag_call(pad_e(m_t, self._e_full_pad))  # (d*d, N_pad)

        tril_flat = jnp.transpose(tril_t[:, :self._E_tril])     # (E_tril, d*d)
        diag_flat = jnp.transpose(diag_t[:, :self.size])        # (N, d*d)

        saved_tril_maps = tril_flat.reshape(self._E_tril, d, d)
        tril_vals = tril_flat.reshape(-1)
        diag_vals = diag_flat.reshape(-1)

        tril_indices = jnp.asarray(self.tril_indices)
        diag_indices = jnp.asarray(self.diag_indices)
        triu_indices = tril_indices[::-1]                       # swap row <-> col
        non_diag_indices = jnp.concatenate([tril_indices, triu_indices], axis=1)
        non_diag_values = jnp.concatenate([tril_vals, tril_vals])
        out_edge_index = jnp.concatenate([non_diag_indices, diag_indices], axis=1)
        weights = jnp.concatenate([non_diag_values, diag_vals])
        return ((out_edge_index, weights), saved_tril_maps)


# ----------------------------------------------------------------------------
if __name__ == "__main__":
    size = 8      # number of nodes
    d = 4         # sheaf stalk dimension

    # undirected ring graph, both directions present
    src, dst = [], []
    for i in range(size):
        a, b = i, (i + 1) % size
        src += [a, b]
        dst += [b, a]
    edge_index = np.stack([np.asarray(src), np.asarray(dst)]).astype(np.int32)

    builder = GeneralLaplacianBuilder(size, edge_index, d)

    key = jax.random.PRNGKey(0)
    maps = jax.random.normal(key, (edge_index.shape[1], d, d), dtype=jnp.float32)

    (out_edge_index, weights), saved_tril = builder.forward(maps)
    jax.block_until_ready(weights)
    jax.block_until_ready(saved_tril)

    # ---------------- plain-numpy reference of the forward pass ----------------
    m = np.asarray(maps)
    li, ri = builder.left_right_idx
    tril_ref = -np.einsum('eki,ekj->eij', m[li], m[ri])
    per_edge = np.einsum('eki,ekj->eij', m, m)
    diag_ref = np.zeros((size, d, d), dtype=np.float32)
    for e in range(edge_index.shape[1]):
        diag_ref[edge_index[0, e]] += per_edge[e]
    w_ref = np.concatenate([tril_ref.reshape(-1),
                            tril_ref.reshape(-1),
                            diag_ref.reshape(-1)])

    out_edge_index_np = np.asarray(out_edge_index)
    weights_np = np.asarray(weights)
    assert out_edge_index_np.shape == (2, w_ref.shape[0])

    n_tril_vals = tril_ref.size
    # tril path is pure f32 (tight tolerance); diag path rounds the per-edge outer
    # products to bf16 before the f32 MXU accumulation (looser tolerance).
    assert np.allclose(weights_np[:2 * n_tril_vals], w_ref[:2 * n_tril_vals],
                       atol=1e-4, rtol=1e-4)
    assert np.allclose(weights_np[2 * n_tril_vals:], w_ref[2 * n_tril_vals:],
                       atol=5e-2, rtol=1e-2)
    assert np.allclose(np.asarray(saved_tril), tril_ref, atol=1e-4, rtol=1e-4)

    # ---------- scatter-to-dense check (validates index placement too) ---------
    nd = size * d
    dense = np.zeros((nd, nd), dtype=np.float64)
    np.add.at(dense, (out_edge_index_np[0], out_edge_index_np[1]),
              weights_np.astype(np.float64))
    dense_ref = np.zeros((nd, nd), dtype=np.float64)
    for n in range(size):
        dense_ref[n * d:(n + 1) * d, n * d:(n + 1) * d] = diag_ref[n]
    vrow, vcol = builder.vertex_tril_idx
    for t in range(vrow.shape[0]):
        r, c = int(vrow[t]), int(vcol[t])
        dense_ref[r * d:(r + 1) * d, c * d:(c + 1) * d] = tril_ref[t]
        dense_ref[c * d:(c + 1) * d, r * d:(r + 1) * d] = tril_ref[t].T
    assert np.allclose(dense, dense_ref, atol=5e-2, rtol=1e-2)

    print("KERNEL_OK")
</pallas_src>

<mosaic_0001>
module attributes {stable_mosaic.version = 11 : i64} {
  func.func @_tril_kernel(%arg0: i32, %arg1: memref<4x4x128xf32, #tpu.memory_space<vmem>>, %arg2: memref<4x4x128xf32, #tpu.memory_space<vmem>>, %arg3: memref<16x128xf32, #tpu.memory_space<vmem>>) attributes {dimension_semantics = [#tpu.dimension_semantics<parallel>], iteration_bounds = array<i64: 1>, scalar_prefetch = 0 : i64, scratch_operands = 0 : i64, tpu.core_type = #tpu.core_type<tc>, window_params = [{transform_indices = @transform_0, window_bounds = array<i64: 4, 4, 128>}, {transform_indices = @transform_1, window_bounds = array<i64: 4, 4, 128>}, {transform_indices = @transform_2, window_bounds = array<i64: 16, 128>}]} {
    %c0 = arith.constant 0 : index
    %c0_0 = arith.constant 0 : index
    %c0_1 = arith.constant 0 : index
    %0 = vector.load %arg1[%c0, %c0_0, %c0_1] : memref<4x4x128xf32, #tpu.memory_space<vmem>>, vector<1x4x128xf32>
    %1 = vector.shape_cast %0 : vector<1x4x128xf32> to vector<4x128xf32>
    %c0_2 = arith.constant 0 : index
    %c0_3 = arith.constant 0 : index
    %c0_4 = arith.constant 0 : index
    %2 = vector.load %arg2[%c0_2, %c0_3, %c0_4] : memref<4x4x128xf32, #tpu.memory_space<vmem>>, vector<1x4x128xf32>
    %3 = vector.shape_cast %2 : vector<1x4x128xf32> to vector<4x128xf32>
    %4 = vector.shape_cast %1 : vector<4x128xf32> to vector<4x1x128xf32>
    %5 = vector.shape_cast %4 : vector<4x1x128xf32> to vector<4x1x128xf32>
    %6 = vector.broadcast %5 : vector<4x1x128xf32> to vector<4x4x128xf32>
    %7 = vector.shape_cast %6 : vector<4x4x128xf32> to vector<16x128xf32>
    %8 = vector.shape_cast %3 : vector<4x128xf32> to vector<1x4x128xf32>
    %9 = vector.shape_cast %8 : vector<1x4x128xf32> to vector<1x4x128xf32>
    %10 = vector.broadcast %9 : vector<1x4x128xf32> to vector<4x4x128xf32>
    %11 = vector.shape_cast %10 : vector<4x4x128xf32> to vector<16x128xf32>
    %12 = arith.mulf %7, %11 : vector<16x128xf32>
    %c1 = arith.constant 1 : index
    %c0_5 = arith.constant 0 : index
    %c0_6 = arith.constant 0 : index
    %13 = vector.load %arg1[%c1, %c0_5, %c0_6] : memref<4x4x128xf32, #tpu.memory_space<vmem>>, vector<1x4x128xf32>
    %14 = vector.shape_cast %13 : vector<1x4x128xf32> to vector<4x128xf32>
    %c1_7 = arith.constant 1 : index
    %c0_8 = arith.constant 0 : index
    %c0_9 = arith.constant 0 : index
    %15 = vector.load %arg2[%c1_7, %c0_8, %c0_9] : memref<4x4x128xf32, #tpu.memory_space<vmem>>, vector<1x4x128xf32>
    %16 = vector.shape_cast %15 : vector<1x4x128xf32> to vector<4x128xf32>
    %17 = vector.shape_cast %14 : vector<4x128xf32> to vector<4x1x128xf32>
    %18 = vector.shape_cast %17 : vector<4x1x128xf32> to vector<4x1x128xf32>
    %19 = vector.broadcast %18 : vector<4x1x128xf32> to vector<4x4x128xf32>
    %20 = vector.shape_cast %19 : vector<4x4x128xf32> to vector<16x128xf32>
    %21 = vector.shape_cast %16 : vector<4x128xf32> to vector<1x4x128xf32>
    %22 = vector.shape_cast %21 : vector<1x4x128xf32> to vector<1x4x128xf32>
    %23 = vector.broadcast %22 : vector<1x4x128xf32> to vector<4x4x128xf32>
    %24 = vector.shape_cast %23 : vector<4x4x128xf32> to vector<16x128xf32>
    %25 = arith.mulf %20, %24 : vector<16x128xf32>
    %26 = arith.addf %12, %25 : vector<16x128xf32>
    %c2 = arith.constant 2 : index
    %c0_10 = arith.constant 0 : index
    %c0_11 = arith.constant 0 : index
    %27 = vector.load %arg1[%c2, %c0_10, %c0_11] : memref<4x4x128xf32, #tpu.memory_space<vmem>>, vector<1x4x128xf32>
    %28 = vector.shape_cast %27 : vector<1x4x128xf32> to vector<4x128xf32>
    %c2_12 = arith.constant 2 : index
    %c0_13 = arith.constant 0 : index
    %c0_14 = arith.constant 0 : index
    %29 = vector.load %arg2[%c2_12, %c0_13, %c0_14] : memref<4x4x128xf32, #tpu.memory_space<vmem>>, vector<1x4x128xf32>
    %30 = vector.shape_cast %29 : vector<1x4x128xf32> to vector<4x128xf32>
    %31 = vector.shape_cast %28 : vector<4x128xf32> to vector<4x1x128xf32>
    %32 = vector.shape_cast %31 : vector<4x1x128xf32> to vector<4x1x128xf32>
    %33 = vector.broadcast %32 : vector<4x1x128xf32> to vector<4x4x128xf32>
    %34 = vector.shape_cast %33 : vector<4x4x128xf32> to vector<16x128xf32>
    %35 = vector.shape_cast %30 : vector<4x128xf32> to vector<1x4x128xf32>
    %36 = vector.shape_cast %35 : vector<1x4x128xf32> to vector<1x4x128xf32>
    %37 = vector.broadcast %36 : vector<1x4x128xf32> to vector<4x4x128xf32>
    %38 = vector.shape_cast %37 : vector<4x4x128xf32> to vector<16x128xf32>
    %39 = arith.mulf %34, %38 : vector<16x128xf32>
    %40 = arith.addf %26, %39 : vector<16x128xf32>
    %c3 = arith.constant 3 : index
    %c0_15 = arith.constant 0 : index
    %c0_16 = arith.constant 0 : index
    %41 = vector.load %arg1[%c3, %c0_15, %c0_16] : memref<4x4x128xf32, #tpu.memory_space<vmem>>, vector<1x4x128xf32>
    %42 = vector.shape_cast %41 : vector<1x4x128xf32> to vector<4x128xf32>
    %c3_17 = arith.constant 3 : index
    %c0_18 = arith.constant 0 : index
    %c0_19 = arith.constant 0 : index
    %43 = vector.load %arg2[%c3_17, %c0_18, %c0_19] : memref<4x4x128xf32, #tpu.memory_space<vmem>>, vector<1x4x128xf32>
    %44 = vector.shape_cast %43 : vector<1x4x128xf32> to vector<4x128xf32>
    %45 = vector.shape_cast %42 : vector<4x128xf32> to vector<4x1x128xf32>
    %46 = vector.shape_cast %45 : vector<4x1x128xf32> to vector<4x1x128xf32>
    %47 = vector.broadcast %46 : vector<4x1x128xf32> to vector<4x4x128xf32>
    %48 = vector.shape_cast %47 : vector<4x4x128xf32> to vector<16x128xf32>
    %49 = vector.shape_cast %44 : vector<4x128xf32> to vector<1x4x128xf32>
    %50 = vector.shape_cast %49 : vector<1x4x128xf32> to vector<1x4x128xf32>
    %51 = vector.broadcast %50 : vector<1x4x128xf32> to vector<4x4x128xf32>
    %52 = vector.shape_cast %51 : vector<4x4x128xf32> to vector<16x128xf32>
    %53 = arith.mulf %48, %52 : vector<16x128xf32>
    %54 = arith.addf %40, %53 : vector<16x128xf32>
    %cst = arith.constant 0.000000e+00 : f32
    %55 = vector.broadcast %cst : f32 to vector<16x128xf32>
    %56 = arith.subf %55, %54 : vector<16x128xf32>
    %c0_20 = arith.constant 0 : index
    %c0_21 = arith.constant 0 : index
    %57 = vector.load %arg3[%c0_20, %c0_21] : memref<16x128xf32, #tpu.memory_space<vmem>>, vector<16x128xf32>
    tpu.vector_store %arg3[%c0_20, %c0_21], %56 {strides = array<i32>} : memref<16x128xf32, #tpu.memory_space<vmem>>, vector<16x128xf32>,
    return
  }
  func.func @transform_0(%arg0: i32) -> (i32, i32, i32) {
    %c0_i32 = arith.constant 0 : i32
    %c0_i32_0 = arith.constant 0 : i32
    %c0_i32_1 = arith.constant 0 : i32
    return %c0_i32, %c0_i32_0, %arg0 : i32, i32, i32
  }
  func.func @transform_1(%arg0: i32) -> (i32, i32, i32) {
    %c0_i32 = arith.constant 0 : i32
    %c0_i32_0 = arith.constant 0 : i32
    %c0_i32_1 = arith.constant 0 : i32
    return %c0_i32, %c0_i32_0, %arg0 : i32, i32, i32
  }
  func.func @transform_2(%arg0: i32) -> (i32, i32) {
    %c0_i32 = arith.constant 0 : i32
    %c0_i32_0 = arith.constant 0 : i32
    return %c0_i32, %arg0 : i32, i32
  }
}

</mosaic_0001>

<llo_original>
// kernel: tpu_custom_call.1
$region0: #{tpu_custom_call.1}
  #allocation0 [shape = 'u32[]', space=smem, size = 0x4, offset = 0x4, fixed_abs, tag = 'smem constant byte address 0x4 - core index']
  #allocation1 [shape = 'u32[144,128]{1,0:T(1,128)}', space=vmem, size = 0x12000, scoped, tag = 'internal scratch']
  %s0 = inlined_call_operand.hbm [shape: f32[4,4,128], index: 0, kind: input, shape index: {}]
  %s1 = inlined_call_operand.hbm [shape: f32[4,4,128], index: 1, kind: input, shape index: {}]
  %s2 = inlined_call_operand.hbm [shape: f32[16,128], index: 2, kind: output, shape index: {}]
  %s3 = sld [smem:[#allocation0]]
  $region26: #{tpu_custom_call.1} parent=0
    _
  %s5 = ssub.s32 1, %s3
  %s6 = scalar_select 0, %s5, %s3
  $region1: #{tpu_custom_call.1} parent=0
    #allocation2 [shape = 'u8[8192]{0}', space=vmem, size = 0x2000, scoped, tag = 'input window, operand 0, single buffered']
    #allocation3 [shape = 's32[1]{0}', space=sflag, size = 0x4, scoped, tag = 'scoped memory for tpu_custom_call.1']
    #allocation4 [shape = 's32[1]{0}', space=sflag, size = 0x4, scoped, tag = 'scoped memory for tpu_custom_call.1']
    #allocation5 [shape = 'u8[8192]{0}', space=vmem, size = 0x2000, scoped, tag = 'input window, operand 1, single buffered']
    #allocation6 [shape = 's32[1]{0}', space=sflag, size = 0x4, scoped, tag = 'scoped memory for tpu_custom_call.1']
    #allocation7 [shape = 'u8[8192]{0}', space=vmem, size = 0x2000, scoped, tag = 'output window, operand 0, single buffered']
    %7 = vsyncpa [#allocation3], 0
    %8 = vsyncpa [#allocation6], 0
    %9 = vsyncpa [#allocation4], 0
    // Predicated region
    $region2: #{tpu_custom_call.1} parent=1 // pred_check
      _
    $region3: #{tpu_custom_call.1} parent=1 // pred_check_branch
      %11 = sbr.rel (0) target = $region5
    $region4: #{tpu_custom_call.1} parent=1 // pred_region
      %s13 = ssub.s32 256, 256
      %14 = vsyncadd [#allocation3], %s13
      %s15 = sshll.u32 [#allocation2], 4
      %s16 = int_to_ptr.vmem [resolvable:$true] %s15
      %21 = dma.hbm_to_vmem [thread:$0]  %s0, 256, %s16, [#allocation3], 64, 64, 4
    $region5: #{tpu_custom_call.1} parent=1 // pred_fallthru
      _
    // Predicated region
    $region6: #{tpu_custom_call.1} parent=1 // pred_check
      _
    $region7: #{tpu_custom_call.1} parent=1 // pred_check_branch
      %23 = sbr.rel (0) target = $region9
    $region8: #{tpu_custom_call.1} parent=1 // pred_region
      %s25 = ssub.s32 256, 256
      %26 = vsyncadd [#allocation6], %s25
      %s27 = sshll.u32 [#allocation5], 4
      %s28 = int_to_ptr.vmem [resolvable:$true] %s27
      %33 = dma.hbm_to_vmem [thread:$0]  %s1, 256, %s28, [#allocation6], 64, 64, 4
    $region9: #{tpu_custom_call.1} parent=1 // pred_fallthru
      _
    // Predicated region
    $region10: #{tpu_custom_call.1} parent=1 // pred_check
      _
    $region11: #{tpu_custom_call.1} parent=1 // pred_check_branch
      %35 = sbr.rel (0) target = $region13
    $region12: #{tpu_custom_call.1} parent=1 // pred_region
      %36 = dma.done [#allocation3], 256
    $region13: #{tpu_custom_call.1} parent=1 // pred_fallthru
      _
    // Predicated region
    $region14: #{tpu_custom_call.1} parent=1 // pred_check
      _
    $region15: #{tpu_custom_call.1} parent=1 // pred_check_branch
      %38 = sbr.rel (0) target = $region17
    $region16: #{tpu_custom_call.1} parent=1 // pred_region
      %39 = dma.done [#allocation6], 256
    $region17: #{tpu_custom_call.1} parent=1 // pred_fallthru
      _
    %v40 = vld [vmem:[#allocation2] sm:$0xf]
    %v41 = vld [vmem:[#allocation5] sm:$0xf]
    %v44 = vunpack.c.l.s4 1966171168
    %v45 = vunpack.c.0.s8 %v44
    %v46 = vlaneseq
    %v47 = vshrl.u32 %v46, 7
    %v48 = vsub.s32 %v45, %v47
    %v49 = vrot.slane %v40, %v48
    %v50 = vcombine.high %v49, %v49
    %v52 = vunpack.c.l.s4 1966171168
    %v53 = vunpack.c.0.s8 %v52
    %v54 = vlaneseq
    %v55 = vshrl.u32 %v54, 7
    %v56 = vsub.s32 %v53, %v55
    %v57 = vrot.slane %v49, %v56
    %v59 = vunpack.c.l.s4 1966171168
    %v60 = vunpack.c.0.s8 %v59
    %v61 = vlaneseq
    %v62 = vshrl.u32 %v61, 7
    %v63 = vsub.s32 %v60, %v62
    %v64 = vrot.slane %v50, %v63
    %v65 = vcombine.high %v57, %v57
    %v66 = vcombine.high %v64, %v64
    %v67 = vlaneseq
    %v68 = vshrl.u32 %v67, 7
    %v69 = vsub.s32 0, %v68
    %v70 = vrot.slane %v57, %v69
    %v71 = vlaneseq
    %v72 = vshrl.u32 %v71, 7
    %v73 = vsub.s32 0, %v72
    %v74 = vrot.slane %v64, %v73
    %v75 = vlaneseq
    %v76 = vshrl.u32 %v75, 7
    %v77 = vsub.s32 0, %v76
    %v78 = vrot.slane %v65, %v77
    %v79 = vlaneseq
    %v80 = vshrl.u32 %v79, 7
    %v81 = vsub.s32 0, %v80
    %v82 = vrot.slane %v66, %v81
    %v87 = vmul.f32 %v70, %v41
    %v88 = vmul.f32 %v74, %v41
    %v89 = vmul.f32 %v78, %v41
    %v90 = vmul.f32 %v82, %v41
    %s91 = scalar_lea.vmem [#allocation2], 4
    %v92 = vld [vmem:[%s91] sm:$0xf]
    %s93 = scalar_lea.vmem [#allocation5], 4
    %v94 = vld [vmem:[%s93] sm:$0xf]
    %v97 = vunpack.c.l.s4 1966171168
    %v98 = vunpack.c.0.s8 %v97
    %v99 = vlaneseq
    %v100 = vshrl.u32 %v99, 7
    %v101 = vsub.s32 %v98, %v100
    %v102 = vrot.slane %v92, %v101
    %v103 = vcombine.high %v102, %v102
    %v105 = vunpack.c.l.s4 1966171168
    %v106 = vunpack.c.0.s8 %v105
    %v107 = vlaneseq
    %v108 = vshrl.u32 %v107, 7
    %v109 = vsub.s32 %v106, %v108
    %v110 = vrot.slane %v102, %v109
    %v112 = vunpack.c.l.s4 1966171168
    %v113 = vunpack.c.0.s8 %v112
    %v114 = vlaneseq
    %v115 = vshrl.u32 %v114, 7
    %v116 = vsub.s32 %v113, %v115
    %v117 = vrot.slane %v103, %v116
    %v118 = vcombine.high %v110, %v110
    %v119 = vcombine.high %v117, %v117
    %v120 = vlaneseq
    %v121 = vshrl.u32 %v120, 7
    %v122 = vsub.s32 0, %v121
    %v123 = vrot.slane %v110, %v122
    %v124 = vlaneseq
    %v125 = vshrl.u32 %v124, 7
    %v126 = vsub.s32 0, %v125
    %v127 = vrot.slane %v117, %v126
    %v128 = vlaneseq
    %v129 = vshrl.u32 %v128, 7
    %v130 = vsub.s32 0, %v129
    %v131 = vrot.slane %v118, %v130
    %v132 = vlaneseq
    %v133 = vshrl.u32 %v132, 7
    %v134 = vsub.s32 0, %v133
    %v135 = vrot.slane %v119, %v134
    %v140 = vmul.f32 %v123, %v94
    %v141 = vmul.f32 %v127, %v94
    %v142 = vmul.f32 %v131, %v94
    %v143 = vmul.f32 %v135, %v94
    %v144 = vadd.f32 %v87, %v140
    %v145 = vadd.f32 %v88, %v141
    %v146 = vadd.f32 %v89, %v142
    %v147 = vadd.f32 %v90, %v143
    %s148 = scalar_lea.vmem [#allocation2], 8
    %v149 = vld [vmem:[%s148] sm:$0xf]
    %s150 = scalar_lea.vmem [#allocation5], 8
    %v151 = vld [vmem:[%s150] sm:$0xf]
    %v154 = vunpack.c.l.s4 1966171168
    %v155 = vunpack.c.0.s8 %v154
    %v156 = vlaneseq
    %v157 = vshrl.u32 %v156, 7
    %v158 = vsub.s32 %v155, %v157
    %v159 = vrot.slane %v149, %v158
    %v160 = vcombine.high %v159, %v159
    %v162 = vunpack.c.l.s4 1966171168
    %v163 = vunpack.c.0.s8 %v162
    %v164 = vlaneseq
    %v165 = vshrl.u32 %v164, 7
    %v166 = vsub.s32 %v163, %v165
    %v167 = vrot.slane %v159, %v166
    %v169 = vunpack.c.l.s4 1966171168
    %v170 = vunpack.c.0.s8 %v169
    %v171 = vlaneseq
    %v172 = vshrl.u32 %v171, 7
    %v173 = vsub.s32 %v170, %v172
    %v174 = vrot.slane %v160, %v173
    %v175 = vcombine.high %v167, %v167
    %v176 = vcombine.high %v174, %v174
    %v177 = vlaneseq
    %v178 = vshrl.u32 %v177, 7
    %v179 = vsub.s32 0, %v178
    %v180 = vrot.slane %v167, %v179
    %v181 = vlaneseq
    %v182 = vshrl.u32 %v181, 7
    %v183 = vsub.s32 0, %v182
    %v184 = vrot.slane %v174, %v183
    %v185 = vlaneseq
    %v186 = vshrl.u32 %v185, 7
    %v187 = vsub.s32 0, %v186
    %v188 = vrot.slane %v175, %v187
    %v189 = vlaneseq
    %v190 = vshrl.u32 %v189, 7
    %v191 = vsub.s32 0, %v190
    %v192 = vrot.slane %v176, %v191
    %v197 = vmul.f32 %v180, %v151
    %v198 = vmul.f32 %v184, %v151
    %v199 = vmul.f32 %v188, %v151
    %v200 = vmul.f32 %v192, %v151
    %v201 = vadd.f32 %v144, %v197
    %v202 = vadd.f32 %v145, %v198
    %v203 = vadd.f32 %v146, %v199
    %v204 = vadd.f32 %v147, %v200
    %s205 = scalar_lea.vmem [#allocation2], 12
    %v206 = vld [vmem:[%s205] sm:$0xf]
    %s207 = scalar_lea.vmem [#allocation5], 12
    %v208 = vld [vmem:[%s207] sm:$0xf]
    %v211 = vunpack.c.l.s4 1966171168
    %v212 = vunpack.c.0.s8 %v211
    %v213 = vlaneseq
    %v214 = vshrl.u32 %v213, 7
    %v215 = vsub.s32 %v212, %v214
    %v216 = vrot.slane %v206, %v215
    %v217 = vcombine.high %v216, %v216
    %v219 = vunpack.c.l.s4 1966171168
    %v220 = vunpack.c.0.s8 %v219
    %v221 = vlaneseq
    %v222 = vshrl.u32 %v221, 7
    %v223 = vsub.s32 %v220, %v222
    %v224 = vrot.slane %v216, %v223
    %v226 = vunpack.c.l.s4 1966171168
    %v227 = vunpack.c.0.s8 %v226
    %v228 = vlaneseq
    %v229 = vshrl.u32 %v228, 7
    %v230 = vsub.s32 %v227, %v229
    %v231 = vrot.slane %v217, %v230
    %v232 = vcombine.high %v224, %v224
    %v233 = vcombine.high %v231, %v231
    %v234 = vlaneseq
    %v235 = vshrl.u32 %v234, 7
    %v236 = vsub.s32 0, %v235
    %v237 = vrot.slane %v224, %v236
    %v238 = vlaneseq
    %v239 = vshrl.u32 %v238, 7
    %v240 = vsub.s32 0, %v239
    %v241 = vrot.slane %v231, %v240
    %v242 = vlaneseq
    %v243 = vshrl.u32 %v242, 7
    %v244 = vsub.s32 0, %v243
    %v245 = vrot.slane %v232, %v244
    %v246 = vlaneseq
    %v247 = vshrl.u32 %v246, 7
    %v248 = vsub.s32 0, %v247
    %v249 = vrot.slane %v233, %v248
    %v254 = vmul.f32 %v237, %v208
    %v255 = vmul.f32 %v241, %v208
    %v256 = vmul.f32 %v245, %v208
    %v257 = vmul.f32 %v249, %v208
    %v258 = vadd.f32 %v201, %v254
    %v259 = vadd.f32 %v202, %v255
    %v260 = vadd.f32 %v203, %v256
    %v261 = vadd.f32 %v204, %v257
    %v262 = vsub.f32 0.0, %v258
    %v263 = vsub.f32 0.0, %v259
    %v264 = vsub.f32 0.0, %v260
    %v265 = vsub.f32 0.0, %v261
    %v270 = vcombine.low %v262, %v263
    %v271 = vcombine.low %v264, %v265
    %274 = vst [vmem:[#allocation7] sm:$0xff] %v270
    %275 = vst [vmem:[#allocation7 + $0x8] sm:$0xff] %v271
    // Predicated region
    $region18: #{tpu_custom_call.1} parent=1 // pred_check
      _
    $region19: #{tpu_custom_call.1} parent=1 // pred_check_branch
      %277 = sbr.rel (0) target = $region21
    $region20: #{tpu_custom_call.1} parent=1 // pred_region
      %s279 = ssub.s32 256, 256
      %280 = vsyncadd [#allocation4], %s279
      %s281 = sshll.u32 [#allocation7], 4
      %s282 = int_to_ptr.vmem [resolvable:$true] %s281
      %287 = dma.vmem_to_hbm [thread:$0]  %s282, 256, %s2, [#allocation4], 128, 128, 8
    $region21: #{tpu_custom_call.1} parent=1 // pred_fallthru
      _
    // Predicated region
    $region22: #{tpu_custom_call.1} parent=1 // pred_check
      _
    $region23: #{tpu_custom_call.1} parent=1 // pred_check_branch
      %289 = sbr.rel (0) target = $region25
    $region24: #{tpu_custom_call.1} parent=1 // pred_region
      %290 = dma.done [#allocation4], 256
    $region25: #{tpu_custom_call.1} parent=1 // pred_fallthru
      _
    %291 = vsyncpa [#allocation3], 1
    %292 = vsyncpa [#allocation6], 1
    %293 = vsyncpa [#allocation4], 1

</llo_original>
